<compile_context>
chip_gen: v7x
topology: tpu7x:2x2x1
jax: 0.10.0
libtpu: 0.0.40
codegen_flags: <defaults>
</compile_context>

<pallas_src>
import functools

import jax
import jax.numpy as jnp
from jax.experimental import pallas as pl
from jax.experimental.pallas import tpu as pltpu

BN_EPS = 1e-5
_LANE = 128


def _round_up(x, m):
    return ((x + m - 1) // m) * m


# ---------------------------------------------------------------------------
# Pass 1: h = x @ W1 + b1  (bf16 MXU operands, f32 accumulate)
#         + per-tile partial BN1 statistics (sum, sum of squares)
# ---------------------------------------------------------------------------
def _fc1_stats_kernel(x_ref, w1_ref, b1_ref, h_ref, s1_ref, ss1_ref,
                      *, tm, m_valid, mask_rows):
    x = x_ref[...]                                               # (TM, Cin) f32
    h = jnp.dot(x.astype(jnp.bfloat16), w1_ref[...],
                preferred_element_type=jnp.float32) + b1_ref[...]
    h_ref[...] = h
    if mask_rows:  # mask rows beyond the true M out of the batch statistics
        i = pl.program_id(0)
        rows = jax.lax.broadcasted_iota(jnp.int32, h.shape, 0) + i * tm
        h = jnp.where(rows < m_valid, h, 0.0)
    s1_ref[...] = jnp.sum(h, axis=0, keepdims=True)[None]
    ss1_ref[...] = jnp.sum(h * h, axis=0, keepdims=True)[None]


# ---------------------------------------------------------------------------
# Pass 2: apply folded BN1 (single FMA) + ReLU, y = a @ W2 + b2,
#         + per-tile partial BN2 statistics
# ---------------------------------------------------------------------------
def _fc2_stats_kernel(h_ref, sc1_ref, sh1_ref, w2_ref, b2_ref,
                      y_ref, s2_ref, ss2_ref, *, tm, m_valid, mask_rows):
    a = jnp.maximum(h_ref[...] * sc1_ref[...] + sh1_ref[...], 0.0)   # f32
    y = jnp.dot(a.astype(jnp.bfloat16), w2_ref[...],
                preferred_element_type=jnp.float32) + b2_ref[...]
    y_ref[...] = y
    if mask_rows:
        i = pl.program_id(0)
        rows = jax.lax.broadcasted_iota(jnp.int32, y.shape, 0) + i * tm
        y = jnp.where(rows < m_valid, y, 0.0)
    s2_ref[...] = jnp.sum(y, axis=0, keepdims=True)[None]
    ss2_ref[...] = jnp.sum(y * y, axis=0, keepdims=True)[None]


# ---------------------------------------------------------------------------
# Pass 3: apply folded BN2 (single FMA) + ReLU
# ---------------------------------------------------------------------------
def _bn_relu_kernel(y_ref, sc2_ref, sh2_ref, o_ref):
    o_ref[...] = jnp.maximum(y_ref[...] * sc2_ref[...] + sh2_ref[...], 0.0)


def _bn_fold(total, total_sq, count, gamma, beta):
    """Fold BN into per-channel scale/shift: y = x*scale + shift (f32)."""
    mean = total / count
    var = jnp.maximum(total_sq / count - mean * mean, 0.0)   # biased var
    scale = gamma * jax.lax.rsqrt(var + BN_EPS)
    shift = beta - mean * scale
    return scale, shift


def mlp_forward(x, params, *, tm_cap=1024):
    """x: (B, N, Cin) float32. Returns (B, N, Cout) float32."""
    w1, b1, g1, be1, w2, b2, g2, be2 = params
    B, N, Cin = x.shape
    H = w1.shape[1]
    Cout = w2.shape[1]
    M = B * N

    # Lane-dense feature dims (multiples of 128) -> unmasked stores, full vregs.
    Hp = _round_up(H, _LANE)
    Cp = _round_up(Cout, _LANE)

    # Re-derive TM from a conservative VMEM budget (v7x: 64 MiB physical).
    # Worst-case per-row bytes across passes, double-buffered input + output.
    bytes_per_row = 4 * (Cin + 2 * Hp + 2 * Cp)
    vmem_budget = 24 * 1024 * 1024
    tm_budget = max(8, (vmem_budget // (2 * bytes_per_row)) // 8 * 8)
    TM = min(tm_cap, tm_budget, _round_up(M, 8))
    Mp = _round_up(M, TM)
    n_tiles = Mp // TM
    mask_rows = (Mp != M)

    x2d = x.reshape(M, Cin).astype(jnp.float32)
    if Mp != M:
        x2d = jnp.pad(x2d, ((0, Mp - M), (0, 0)))

    # Zero-pad params to lane-dense widths; weights cast once to bf16 for the
    # MXU, biases / BN affine params stay f32.
    w1p = jnp.pad(w1, ((0, 0), (0, Hp - H))).astype(jnp.bfloat16)
    w2p = jnp.pad(w2, ((0, Hp - H), (0, Cp - Cout))).astype(jnp.bfloat16)
    b1p = jnp.pad(b1, ((0, 0), (0, Hp - H))).astype(jnp.float32)
    b2p = jnp.pad(b2, ((0, 0), (0, Cp - Cout))).astype(jnp.float32)
    g1p = jnp.pad(g1, ((0, 0), (0, Hp - H))).astype(jnp.float32)
    be1p = jnp.pad(be1, ((0, 0), (0, Hp - H))).astype(jnp.float32)
    g2p = jnp.pad(g2, ((0, 0), (0, Cp - Cout))).astype(jnp.float32)
    be2p = jnp.pad(be2, ((0, 0), (0, Cp - Cout))).astype(jnp.float32)

    cparams = pltpu.CompilerParams(
        dimension_semantics=("parallel",),
        vmem_limit_bytes=48 * 1024 * 1024,
    )

    def full_spec(shape):           # resident operand (constant index map)
        return pl.BlockSpec(shape, lambda i: tuple(0 for _ in shape))

    def row_tile(c):                # (TM, c) tile marching over M
        return pl.BlockSpec((TM, c), lambda i: (i, 0))

    def stat_tile(c):               # one (1, 1, c) partial-stats slab per tile
        return pl.BlockSpec((1, 1, c), lambda i: (i, 0, 0))

    # ---- Pass 1: fc1 + BN1 partial stats -----------------------------------
    h, s1, ss1 = pl.pallas_call(
        functools.partial(_fc1_stats_kernel, tm=TM, m_valid=M,
                          mask_rows=mask_rows),
        grid=(n_tiles,),
        in_specs=[row_tile(Cin), full_spec((Cin, Hp)), full_spec((1, Hp))],
        out_specs=(row_tile(Hp), stat_tile(Hp), stat_tile(Hp)),
        out_shape=(
            jax.ShapeDtypeStruct((Mp, Hp), jnp.float32),
            jax.ShapeDtypeStruct((n_tiles, 1, Hp), jnp.float32),
            jax.ShapeDtypeStruct((n_tiles, 1, Hp), jnp.float32),
        ),
        compiler_params=cparams,
    )(x2d, w1p, b1p)

    sc1, sh1 = _bn_fold(s1.sum(axis=0), ss1.sum(axis=0), float(M), g1p, be1p)

    # ---- Pass 2: BN1 apply + ReLU + fc2 + BN2 partial stats -----------------
    y, s2, ss2 = pl.pallas_call(
        functools.partial(_fc2_stats_kernel, tm=TM, m_valid=M,
                          mask_rows=mask_rows),
        grid=(n_tiles,),
        in_specs=[row_tile(Hp), full_spec((1, Hp)), full_spec((1, Hp)),
                  full_spec((Hp, Cp)), full_spec((1, Cp))],
        out_specs=(row_tile(Cp), stat_tile(Cp), stat_tile(Cp)),
        out_shape=(
            jax.ShapeDtypeStruct((Mp, Cp), jnp.float32),
            jax.ShapeDtypeStruct((n_tiles, 1, Cp), jnp.float32),
            jax.ShapeDtypeStruct((n_tiles, 1, Cp), jnp.float32),
        ),
        compiler_params=cparams,
    )(h, sc1, sh1, w2p, b2p)

    sc2, sh2 = _bn_fold(s2.sum(axis=0), ss2.sum(axis=0), float(M), g2p, be2p)

    # ---- Pass 3: BN2 apply + ReLU -------------------------------------------
    out = pl.pallas_call(
        _bn_relu_kernel,
        grid=(n_tiles,),
        in_specs=[row_tile(Cp), full_spec((1, Cp)), full_spec((1, Cp))],
        out_specs=row_tile(Cp),
        out_shape=jax.ShapeDtypeStruct((Mp, Cp), jnp.float32),
        compiler_params=cparams,
    )(y, sc2, sh2)

    return out[:M, :Cout].reshape(B, N, Cout)


def init_params(key, in_features, hidden_features, out_features):
    """Deterministic synthetic parameters matching the PyTorch module shapes."""
    ks = jax.random.split(key, 4)
    # nn.Linear stores (out, in); we pass transposed (in, out) for x @ W.
    w1 = (jax.random.normal(ks[0], (in_features, hidden_features), jnp.float32)
          * (1.0 / jnp.sqrt(in_features)))
    b1 = jax.random.normal(ks[1], (1, hidden_features), jnp.float32) * 0.02
    w2 = (jax.random.normal(ks[2], (hidden_features, out_features), jnp.float32)
          * (1.0 / jnp.sqrt(hidden_features)))
    b2 = jax.random.normal(ks[3], (1, out_features), jnp.float32) * 0.02
    # BatchNorm affine params (default init: gamma=1, beta=0)
    g1 = jnp.ones((1, hidden_features), jnp.float32)
    be1 = jnp.zeros((1, hidden_features), jnp.float32)
    g2 = jnp.ones((1, out_features), jnp.float32)
    be2 = jnp.zeros((1, out_features), jnp.float32)
    return (w1, b1, g1, be1, w2, b2, g2, be2)


def mlp_reference(x, params):
    """Pure-JAX f32 reference mirroring the PyTorch forward (train-mode BN)."""
    w1, b1, g1, be1, w2, b2, g2, be2 = params
    B, N, _ = x.shape
    h = x.reshape(B * N, -1) @ w1 + b1
    m = h.mean(0, keepdims=True)
    v = ((h - m) ** 2).mean(0, keepdims=True)
    h = jnp.maximum((h - m) * jax.lax.rsqrt(v + BN_EPS) * g1 + be1, 0.0)
    y = h @ w2 + b2
    m = y.mean(0, keepdims=True)
    v = ((y - m) ** 2).mean(0, keepdims=True)
    y = jnp.maximum((y - m) * jax.lax.rsqrt(v + BN_EPS) * g2 + be2, 0.0)
    return y.reshape(B, N, -1)


if __name__ == "__main__":
    B, N = 2, 8
    in_features, hidden_features, out_features = 32, 64, 32

    key = jax.random.PRNGKey(0)
    kx, kp = jax.random.split(key)
    x = jax.random.normal(kx, (B, N, in_features), jnp.float32)
    params = init_params(kp, in_features, hidden_features, out_features)

    out = mlp_forward(x, params)
    out = jax.block_until_ready(out)

    ref = mlp_reference(x, params)
    assert out.shape == (B, N, out_features)
    assert bool(jnp.all(jnp.isfinite(out)))
    # Tolerance loosened vs the all-f32 version: matmul operands run in bf16
    # on the MXU (f32 accumulation; BN stats/normalization stay in f32).
    assert jnp.allclose(out, ref, atol=5e-2, rtol=5e-2), \
        float(jnp.max(jnp.abs(out - ref)))

    print("KERNEL_OK")
</pallas_src>

<mosaic_0001>
module attributes {stable_mosaic.version = 11 : i64} {
  func.func @_fc1_stats_kernel(%arg0: i32, %arg1: memref<16x32xf32, #tpu.memory_space<vmem>>, %arg2: memref<32x128xbf16, #tpu.memory_space<vmem>>, %arg3: memref<1x128xf32, #tpu.memory_space<vmem>>, %arg4: memref<16x128xf32, #tpu.memory_space<vmem>>, %arg5: memref<1x1x128xf32, #tpu.memory_space<vmem>>, %arg6: memref<1x1x128xf32, #tpu.memory_space<vmem>>) attributes {dimension_semantics = [#tpu.dimension_semantics<parallel>], iteration_bounds = array<i64: 1>, scalar_prefetch = 0 : i64, scratch_operands = 0 : i64, tpu.core_type = #tpu.core_type<tc>, window_params = [{transform_indices = @transform_0, window_bounds = array<i64: 16, 32>}, {pipeline_mode = #tpu.pipeline_mode<synchronous>, transform_indices = @transform_1, window_bounds = array<i64: 32, 128>}, {pipeline_mode = #tpu.pipeline_mode<synchronous>, transform_indices = @transform_2, window_bounds = array<i64: 1, 128>}, {transform_indices = @transform_3, window_bounds = array<i64: 16, 128>}, {transform_indices = @transform_4, window_bounds = array<i64: 1, 1, 128>}, {transform_indices = @transform_5, window_bounds = array<i64: 1, 1, 128>}]} {
    %c0 = arith.constant 0 : index
    %c0_0 = arith.constant 0 : index
    %0 = vector.load %arg1[%c0, %c0_0] : memref<16x32xf32, #tpu.memory_space<vmem>>, vector<16x32xf32>
    %1 = arith.truncf %0 : vector<16x32xf32> to vector<16x32xbf16>
    %c0_1 = arith.constant 0 : index
    %c0_2 = arith.constant 0 : index
    %2 = vector.load %arg2[%c0_1, %c0_2] : memref<32x128xbf16, #tpu.memory_space<vmem>>, vector<32x128xbf16>
    %cst = arith.constant dense<0.000000e+00> : vector<16x128xf32>
    %3 = tpu.matmul %1, %2, %cst {dimension_numbers = #tpu.dot_dimension_numbers<[1], [0], [0], [1], [0, 0, 1, 1], [], []>} : vector<16x32xbf16>, vector<32x128xbf16>, vector<16x128xf32> -> vector<16x128xf32>
    %c0_3 = arith.constant 0 : index
    %c0_4 = arith.constant 0 : index
    %4 = vector.load %arg3[%c0_3, %c0_4] : memref<1x128xf32, #tpu.memory_space<vmem>>, vector<1x128xf32>
    %5 = vector.broadcast %4 : vector<1x128xf32> to vector<16x128xf32>
    %6 = arith.addf %3, %5 : vector<16x128xf32>
    %c0_5 = arith.constant 0 : index
    %c0_6 = arith.constant 0 : index
    %7 = vector.load %arg4[%c0_5, %c0_6] : memref<16x128xf32, #tpu.memory_space<vmem>>, vector<16x128xf32>
    tpu.vector_store %arg4[%c0_5, %c0_6], %6 {strides = array<i32>} : memref<16x128xf32, #tpu.memory_space<vmem>>, vector<16x128xf32>,
    %cst_7 = arith.constant dense<0.000000e+00> : vector<128xf32>
    %8 = vector.multi_reduction <add>, %6, %cst_7 [0] : vector<16x128xf32> to vector<128xf32>
    %9 = vector.shape_cast %8 : vector<128xf32> to vector<1x128xf32>
    %10 = vector.shape_cast %9 : vector<1x128xf32> to vector<1x1x128xf32>
    %c0_8 = arith.constant 0 : index
    %c0_9 = arith.constant 0 : index
    %c0_10 = arith.constant 0 : index
    %11 = vector.load %arg5[%c0_8, %c0_9, %c0_10] : memref<1x1x128xf32, #tpu.memory_space<vmem>>, vector<1x1x128xf32>
    tpu.vector_store %arg5[%c0_8, %c0_9, %c0_10], %10 {strides = array<i32>} : memref<1x1x128xf32, #tpu.memory_space<vmem>>, vector<1x1x128xf32>,
    %12 = arith.mulf %6, %6 : vector<16x128xf32>
    %cst_11 = arith.constant dense<0.000000e+00> : vector<128xf32>
    %13 = vector.multi_reduction <add>, %12, %cst_11 [0] : vector<16x128xf32> to vector<128xf32>
    %14 = vector.shape_cast %13 : vector<128xf32> to vector<1x128xf32>
    %15 = vector.shape_cast %14 : vector<1x128xf32> to vector<1x1x128xf32>
    %c0_12 = arith.constant 0 : index
    %c0_13 = arith.constant 0 : index
    %c0_14 = arith.constant 0 : index
    %16 = vector.load %arg6[%c0_12, %c0_13, %c0_14] : memref<1x1x128xf32, #tpu.memory_space<vmem>>, vector<1x1x128xf32>
    tpu.vector_store %arg6[%c0_12, %c0_13, %c0_14], %15 {strides = array<i32>} : memref<1x1x128xf32, #tpu.memory_space<vmem>>, vector<1x1x128xf32>,
    return
  }
  func.func @transform_0(%arg0: i32) -> (i32, i32) {
    %c0_i32 = arith.constant 0 : i32
    %c0_i32_0 = arith.constant 0 : i32
    return %arg0, %c0_i32 : i32, i32
  }
  func.func @transform_1(%arg0: i32) -> (i32, i32) {
    %c0_i32 = arith.constant 0 : i32
    %c0_i32_0 = arith.constant 0 : i32
    %c0_i32_1 = arith.constant 0 : i32
    return %c0_i32, %c0_i32_0 : i32, i32
  }
  func.func @transform_2(%arg0: i32) -> (i32, i32) {
    %c0_i32 = arith.constant 0 : i32
    %c0_i32_0 = arith.constant 0 : i32
    %c0_i32_1 = arith.constant 0 : i32
    return %c0_i32, %c0_i32_0 : i32, i32
  }
  func.func @transform_3(%arg0: i32) -> (i32, i32) {
    %c0_i32 = arith.constant 0 : i32
    %c0_i32_0 = arith.constant 0 : i32
    return %arg0, %c0_i32 : i32, i32
  }
  func.func @transform_4(%arg0: i32) -> (i32, i32, i32) {
    %c0_i32 = arith.constant 0 : i32
    %c0_i32_0 = arith.constant 0 : i32
    %c0_i32_1 = arith.constant 0 : i32
    return %arg0, %c0_i32, %c0_i32_0 : i32, i32, i32
  }
  func.func @transform_5(%arg0: i32) -> (i32, i32, i32) {
    %c0_i32 = arith.constant 0 : i32
    %c0_i32_0 = arith.constant 0 : i32
    %c0_i32_1 = arith.constant 0 : i32
    return %arg0, %c0_i32, %c0_i32_0 : i32, i32, i32
  }
}

</mosaic_0001>

<llo_original>
// kernel: tpu_custom_call.1
$region0: #{tpu_custom_call.1}
  #allocation0 [shape = 'u32[]', space=smem, size = 0x4, offset = 0x4, fixed_abs, tag = 'smem constant byte address 0x4 - core index']
  #allocation1 [shape = 'u32[144,128]{1,0:T(1,128)}', space=vmem, size = 0x12000, scoped, tag = 'internal scratch']
  %s0 = inlined_call_operand.hbm [shape: f32[16,32], index: 0, kind: input, shape index: {}]
  %s1 = inlined_call_operand.hbm [shape: bf16[32,128], index: 1, kind: input, shape index: {}]
  %s2 = inlined_call_operand.vmem [shape: f32[1,128], index: 2, kind: input, shape index: {}]
  %s3 = inlined_call_operand.hbm [shape: f32[16,128], index: 3, kind: output, shape index: {0}]
  %s4 = inlined_call_operand.hbm [shape: f32[1,1,128], index: 4, kind: output, shape index: {1}]
  %s5 = inlined_call_operand.hbm [shape: f32[1,1,128], index: 5, kind: output, shape index: {2}]
  %6 = xla_tuple %s3, %s4, %s5
  %s7 = sld [smem:[#allocation0]]
  $region46: #{tpu_custom_call.1} parent=0
    _
  %s9 = ssub.s32 1, %s7
  %s10 = scalar_select 0, %s9, %s7
  $region1: #{tpu_custom_call.1} parent=0
    #allocation2 [shape = 'u8[8192]{0}', space=vmem, size = 0x2000, scoped, tag = 'input window, operand 0, single buffered']
    #allocation3 [shape = 's32[1]{0}', space=sflag, size = 0x4, scoped, tag = 'scoped memory for tpu_custom_call.1']
    #allocation4 [shape = 's32[1]{0}', space=sflag, size = 0x4, scoped, tag = 'scoped memory for tpu_custom_call.1']
    #allocation5 [shape = 'u8[8192]{0}', space=vmem, size = 0x2000, scoped, tag = 'input window, operand 1, single buffered']
    #allocation6 [shape = 's32[1]{0}', space=sflag, size = 0x4, scoped, tag = 'scoped memory for tpu_custom_call.1']
    #allocation7 [shape = 'u8[8192]{0}', space=vmem, size = 0x2000, scoped, tag = 'output window, operand 0, single buffered']
    #allocation8 [shape = 'u8[512]{0}', space=vmem, size = 0x400, scoped, tag = 'output window, operand 1, single buffered']
    #allocation9 [shape = 's32[1]{0}', space=sflag, size = 0x4, scoped, tag = 'scoped memory for tpu_custom_call.1']
    #allocation10 [shape = 'u8[512]{0}', space=vmem, size = 0x400, scoped, tag = 'output window, operand 2, single buffered']
    %11 = vsyncpa [#allocation3], 0
    %12 = vsyncpa [#allocation6], 0
    %13 = vsyncpa [#allocation4], 0
    %14 = vsyncpa [#allocation9], 0
    // Predicated region
    $region2: #{tpu_custom_call.1} parent=1 // pred_check
      _
    $region3: #{tpu_custom_call.1} parent=1 // pred_check_branch
      %16 = sbr.rel (0) target = $region5
    $region4: #{tpu_custom_call.1} parent=1 // pred_region
      %s18 = ssub.s32 256, 256
      %19 = vsyncadd [#allocation3], %s18
      %s20 = sshll.u32 [#allocation2], 4
      %s21 = int_to_ptr.vmem [resolvable:$true] %s20
      %26 = dma.hbm_to_vmem [thread:$0]  %s0, 256, %s21, [#allocation3], 128, 128, 8
    $region5: #{tpu_custom_call.1} parent=1 // pred_fallthru
      _
    // Predicated region
    $region6: #{tpu_custom_call.1} parent=1 // pred_check
      _
    $region7: #{tpu_custom_call.1} parent=1 // pred_check_branch
      %28 = sbr.rel (0) target = $region9
    $region8: #{tpu_custom_call.1} parent=1 // pred_region
      %s30 = ssub.s32 256, 256
      %31 = vsyncadd [#allocation6], %s30
      %s32 = sshll.u32 [#allocation5], 4
      %s33 = int_to_ptr.vmem [resolvable:$true] %s32
      %38 = dma.hbm_to_vmem [thread:$0]  %s1, 256, %s33, [#allocation6], 64, 64, 4
    $region9: #{tpu_custom_call.1} parent=1 // pred_fallthru
      _
    // Predicated region
    $region10: #{tpu_custom_call.1} parent=1 // pred_check
      _
    $region11: #{tpu_custom_call.1} parent=1 // pred_check_branch
      %40 = sbr.rel (0) target = $region13
    $region12: #{tpu_custom_call.1} parent=1 // pred_region
      _
    $region13: #{tpu_custom_call.1} parent=1 // pred_fallthru
      _
    // Predicated region
    $region14: #{tpu_custom_call.1} parent=1 // pred_check
      _
    $region15: #{tpu_custom_call.1} parent=1 // pred_check_branch
      %42 = sbr.rel (0) target = $region17
    $region16: #{tpu_custom_call.1} parent=1 // pred_region
      %43 = dma.done [#allocation3], 256
    $region17: #{tpu_custom_call.1} parent=1 // pred_fallthru
      _
    // Predicated region
    $region18: #{tpu_custom_call.1} parent=1 // pred_check
      _
    $region19: #{tpu_custom_call.1} parent=1 // pred_check_branch
      %45 = sbr.rel (0) target = $region21
    $region20: #{tpu_custom_call.1} parent=1 // pred_region
      %46 = dma.done [#allocation6], 256
    $region21: #{tpu_custom_call.1} parent=1 // pred_fallthru
      _
    %v48 = vld [vmem:[#allocation2] sm:$0xff]
    %v49 = vld [vmem:[#allocation2 + $0x8] sm:$0xff]
    %v50 = vpack.c.bf16 %v49, %v48
    %v51 = vld [vmem:[#allocation5] sm:$0xf]
    %v52 = vld [vmem:[#allocation5 + $0x4] sm:$0xf]
    %v53 = vld [vmem:[#allocation5 + $0x8] sm:$0xf]
    %v54 = vld [vmem:[#allocation5 + $0xc] sm:$0xf]
    %v55 = vld [vmem:[%s2] sm:$0x1]
    %v57 = vlaneseq
    %v58 = vshrl.u32 %v57, 7
    %v59 = vsub.s32 0, %v58
    %v60 = vrot.slane %v55, %v59
    %v66 = vunpack.c.l.b16 %v51
    %v67 = vunpack.c.l.b16 %v52
    %v68 = vunpack.c.l.b16 %v53
    %v69 = vunpack.c.l.b16 %v54
    %v70 = vpack.c.b16 %v67, %v66
    %v71 = vpack.c.b16 %v69, %v68
    %vm74 = vcmask 261120
    %v76 = vsel %vm74, %v50, 0
    %78 = vmatprep.subr.bf16.mxu0 0
    %79 = vmatpush1.bf16.msra.mxu0 %v70
    %80 = vmatprep.subr.bf16.mxu0 0
    %81 = vmatpush1.bf16.msra.mxu0 %v71
    %82 = vmatprep.subr.bf16.mxu0 0
    %83 = vmatpush1.bf16.msra.mxu0 0
    %84 = vmatprep.subr.bf16.mxu0 0
    %85 = vmatpush1.bf16.msra.mxu0 0
    %86 = vmatprep.subr.bf16.mxu0 0
    %87 = vmatpush1.bf16.msra.mxu0 0
    %88 = vmatprep.subr.bf16.mxu0 0
    %89 = vmatpush1.bf16.msra.mxu0 0
    %90 = vmatprep.subr.bf16.mxu0 0
    %91 = vmatpush1.bf16.msra.mxu0 0
    %92 = vmatprep.subr.bf16.mxu0 0
    %93 = vmatpush1.bf16.msra.mxu0 0
    %94 = vmatprep.subr.bf16.mxu0 0
    %95 = vmatpush1.bf16.msra.mxu0 0
    %96 = vmatprep.subr.bf16.mxu0 0
    %97 = vmatpush1.bf16.msra.mxu0 0
    %98 = vmatprep.subr.bf16.mxu0 0
    %99 = vmatpush1.bf16.msra.mxu0 0
    %100 = vmatprep.subr.bf16.mxu0 0
    %101 = vmatpush1.bf16.msra.mxu0 0
    %102 = vmatprep.subr.bf16.mxu0 0
    %103 = vmatpush1.bf16.msra.mxu0 0
    %104 = vmatprep.subr.bf16.mxu0 0
    %105 = vmatpush1.bf16.msra.mxu0 0
    %106 = vmatprep.subr.bf16.mxu0 0
    %107 = vmatpush1.bf16.msra.mxu0 0
    %108 = vmatprep.subr.bf16.mxu0 0
    %109 = vmatpush1.bf16.msra.mxu0 0
    %110 = vmatprep.mubr.bf16.mxu0 0
    %111 = vmatmul.mubr.bf16.gmra.mrb[0].mxu0 %v76
    %v112 = vpop.f32.mrb[0].mxu0
    %v113 = vadd.f32 %v60, %v112
    %v114 = vpop.f32.mrb[0].mxu0
    %v115 = vpop.f32.mrb[0].mxu0
    %v116 = vadd.f32 %v60, %v115
    %v117 = vpop.f32.mrb[0].mxu0
    %118 = vdwg.mxu0
    %119 = vst [vmem:[#allocation7] sm:$0xff] %v113
    %120 = vst [vmem:[#allocation7 + $0x8] sm:$0xff] %v116
    %v121 = vadd.f32 %v113, %v116
    %v122 = vrot.slane %v121, 4
    %v123 = vadd.f32 %v121, %v122
    %v124 = vrot.slane %v123, 2
    %v125 = vadd.f32 %v123, %v124
    %v126 = vrot.slane %v125, 1
    %v127 = vadd.f32 %v125, %v126
    %128 = vst [vmem:[#allocation8] sm:$0x1] %v127
    %v129 = vmul.f32 %v113, %v113
    %v130 = vmul.f32 %v116, %v116
    %v131 = vadd.f32 %v129, %v130
    %v132 = vrot.slane %v131, 4
    %v133 = vadd.f32 %v131, %v132
    %v134 = vrot.slane %v133, 2
    %v135 = vadd.f32 %v133, %v134
    %v136 = vrot.slane %v135, 1
    %v137 = vadd.f32 %v135, %v136
    %138 = vst [vmem:[#allocation10] sm:$0x1] %v137
    // Predicated region
    $region22: #{tpu_custom_call.1} parent=1 // pred_check
      _
    $region23: #{tpu_custom_call.1} parent=1 // pred_check_branch
      %140 = sbr.rel (0) target = $region25
    $region24: #{tpu_custom_call.1} parent=1 // pred_region
      %s142 = ssub.s32 256, 256
      %143 = vsyncadd [#allocation4], %s142
      %s144 = sshll.u32 [#allocation7], 4
      %s145 = int_to_ptr.vmem [resolvable:$true] %s144
      %150 = dma.vmem_to_hbm [thread:$0]  %s145, 256, %s3, [#allocation4], 128, 128, 8
    $region25: #{tpu_custom_call.1} parent=1 // pred_fallthru
      _
    // Predicated region
    $region26: #{tpu_custom_call.1} parent=1 // pred_check
      _
    $region27: #{tpu_custom_call.1} parent=1 // pred_check_branch
      %152 = sbr.rel (0) target = $region29
    $region28: #{tpu_custom_call.1} parent=1 // pred_region
      %s154 = ssub.s32 16, 16
      %155 = vsyncadd [#allocation9], %s154
      %s157 = sshll.u32 [#allocation8], 4
      %s158 = int_to_ptr.vmem [resolvable:$true] %s157
      %160 = dma.vmem_to_hbm [thread:$0]  %s158, 16, %s4, [#allocation9]
    $region29: #{tpu_custom_call.1} parent=1 // pred_fallthru
      _
    // Predicated region
    $region30: #{tpu_custom_call.1} parent=1 // pred_check
      _
    $region31: #{tpu_custom_call.1} parent=1 // pred_check_branch
      %162 = sbr.rel (0) target = $region33
    $region32: #{tpu_custom_call.1} parent=1 // pred_region
      %s164 = ssub.s32 16, 16
      %165 = vsyncadd [#allocation9], %s164
      %s167 = sshll.u32 [#allocation10], 4
      %s168 = int_to_ptr.vmem [resolvable:$true] %s167
      %170 = dma.vmem_to_hbm [thread:$0]  %s168, 16, %s5, [#allocation9]
    $region33: #{tpu_custom_call.1} parent=1 // pred_fallthru
      _
    // Predicated region
    $region34: #{tpu_custom_call.1} parent=1 // pred_check
      _
    $region35: #{tpu_custom_call.1} parent=1 // pred_check_branch
      %172 = sbr.rel (0) target = $region37
    $region36: #{tpu_custom_call.1} parent=1 // pred_region
      %173 = dma.done [#allocation4], 256
    $region37: #{tpu_custom_call.1} parent=1 // pred_fallthru
      _
    // Predicated region
    $region38: #{tpu_custom_call.1} parent=1 // pred_check
      _
    $region39: #{tpu_custom_call.1} parent=1 // pred_check_branch
      %175 = sbr.rel (0) target = $region41
    $region40: #{tpu_custom_call.1} parent=1 // pred_region
      %176 = dma.done [#allocation9], 16
    $region41: #{tpu_custom_call.1} parent=1 // pred_fallthru
      _
    // Predicated region
    $region42: #{tpu_custom_call.1} parent=1 // pred_check
      _
    $region43: #{tpu_custom_call.1} parent=1 // pred_check_branch
      %178 = sbr.rel (0) target = $region45
    $region44: #{tpu_custom_call.1} parent=1 // pred_region
      %179 = dma.done [#allocation9], 16
    $region45: #{tpu_custom_call.1} parent=1 // pred_fallthru
      _
    %180 = vsyncpa [#allocation3], 1
    %181 = vsyncpa [#allocation6], 1
    %182 = vsyncpa [#allocation4], 1
    %183 = vsyncpa [#allocation9], 1

</llo_original>
